<compile_context>
chip_gen: v7x
topology: tpu7x:2x2x1
jax: 0.10.0
libtpu: 0.0.40
codegen_flags: <defaults>
</compile_context>

<pallas_src>
import functools

import jax
import jax.numpy as jnp
from jax.experimental import pallas as pl
from jax.experimental.pallas import tpu as pltpu


def _round_up(x, m):
    return ((x + m - 1) // m) * m


def _style_loss_kernel(out_ref, sty_ref, partial_ref,
                       sum_o_ref, sumsq_o_ref, sum_s_ref, sumsq_s_ref,
                       *, eps, hw):
    hb = pl.program_id(1)

    @pl.when(hb == 0)
    def _():
        sum_o_ref[...] = jnp.zeros_like(sum_o_ref)
        sumsq_o_ref[...] = jnp.zeros_like(sumsq_o_ref)
        sum_s_ref[...] = jnp.zeros_like(sum_s_ref)
        sumsq_s_ref[...] = jnp.zeros_like(sumsq_s_ref)

    o = out_ref[...].astype(jnp.float32)   # (TILE_R, TILE_HW)
    s = sty_ref[...].astype(jnp.float32)

    sum_o_ref[...] += jnp.sum(o, axis=-1, keepdims=True)
    sumsq_o_ref[...] += jnp.sum(o * o, axis=-1, keepdims=True)
    sum_s_ref[...] += jnp.sum(s, axis=-1, keepdims=True)
    sumsq_s_ref[...] += jnp.sum(s * s, axis=-1, keepdims=True)

    @pl.when(hb == pl.num_programs(1) - 1)
    def _():
        inv_hw = jnp.float32(1.0 / hw)
        inv_hw_m1 = jnp.float32(1.0 / max(hw - 1, 1))      # unbiased (ddof=1)
        mean_o = sum_o_ref[...] * inv_hw
        mean_s = sum_s_ref[...] * inv_hw
        # One-pass variance, accumulated in f32; clamp tiny negative roundoff.
        var_o = (sumsq_o_ref[...] - sum_o_ref[...] * mean_o) * inv_hw_m1
        var_s = (sumsq_s_ref[...] - sum_s_ref[...] * mean_s) * inv_hw_m1
        std_o = jnp.sqrt(jnp.maximum(var_o, 0.0) + eps)
        std_s = jnp.sqrt(jnp.maximum(var_s, 0.0) + eps)
        # Per-row partial loss contribution: (dmean)^2 + (dstd)^2.
        partial_ref[...] = (mean_o - mean_s) ** 2 + (std_o - std_s) ** 2


def style_loss(output_features, style_features, eps=1e-5):
    assert output_features.shape == style_features.shape
    n, c, h, w = output_features.shape
    hw = h * w
    rows = n * c

    # Tile sizes: (8,128)-aligned, capped so 2 inputs x 2 buffers stay well
    # under the scoped-VMEM default on every generation (incl. v7x 64 MiB).
    tile_r = min(256, _round_up(rows, 8))
    tile_hw = min(2048, _round_up(hw, 128))
    rows_pad = _round_up(rows, tile_r)
    hw_pad = _round_up(hw, tile_hw)

    def prep(x):
        x2 = x.reshape(rows, hw)           # keep input dtype (bf16 stays bf16)
        if rows_pad != rows or hw_pad != hw:
            x2 = jnp.pad(x2, ((0, rows_pad - rows), (0, hw_pad - hw)))
        return x2

    out2 = prep(output_features)
    sty2 = prep(style_features)

    grid = (rows_pad // tile_r, hw_pad // tile_hw)
    kernel = functools.partial(_style_loss_kernel, eps=eps, hw=hw)

    itemsize = jnp.dtype(output_features.dtype).itemsize
    cost = pl.CostEstimate(
        flops=6 * rows * hw,
        transcendentals=2 * rows,
        bytes_accessed=2 * rows_pad * hw_pad * itemsize + rows_pad * 4,
    )

    partials = pl.pallas_call(
        kernel,
        out_shape=jax.ShapeDtypeStruct((rows_pad, 1), jnp.float32),
        grid_spec=pltpu.PrefetchScalarGridSpec(
            num_scalar_prefetch=0,
            grid=grid,
            in_specs=[
                pl.BlockSpec((tile_r, tile_hw), lambda r, hb: (r, hb)),
                pl.BlockSpec((tile_r, tile_hw), lambda r, hb: (r, hb)),
            ],
            out_specs=pl.BlockSpec((tile_r, 1), lambda r, hb: (r, 0)),
            scratch_shapes=[pltpu.VMEM((tile_r, 1), jnp.float32)] * 4,
        ),
        compiler_params=pltpu.CompilerParams(
            dimension_semantics=("parallel", "arbitrary"),
            vmem_limit_bytes=48 * 1024 * 1024,
        ),
        cost_estimate=cost,
    )(out2, sty2)

    # Final tiny scalar reduce in the wrapper (padded rows contribute exactly 0).
    return jnp.sum(partials) / jnp.float32(rows)


def _reference_style_loss(output_features, style_features, eps=1e-5):
    def calc_mean_std(x):
        nn, cc, hh, ww = x.shape
        xf = x.reshape(nn, cc, -1).astype(jnp.float32)
        var = jnp.var(xf, axis=2, ddof=1) + eps
        return jnp.mean(xf, axis=2), jnp.sqrt(var)

    om, os = calc_mean_std(output_features)
    sm, ss = calc_mean_std(style_features)
    return jnp.mean((om - sm) ** 2) + jnp.mean((os - ss) ** 2)


if __name__ == "__main__":
    key = jax.random.PRNGKey(0)

    # Primary small test (NCHW, matching the module's convention).
    k1, k2 = jax.random.split(key)
    N, C, H, W = 2, 4, 16, 16
    out_f = jax.random.normal(k1, (N, C, H, W), dtype=jnp.float32)
    sty_f = jax.random.normal(k2, (N, C, H, W), dtype=jnp.float32) * 1.5 + 0.3

    loss = style_loss(out_f, sty_f)
    jax.block_until_ready(loss)
    ref = _reference_style_loss(out_f, sty_f)
    assert jnp.allclose(loss, ref, rtol=1e-4, atol=1e-6), (loss, ref)

    # Extra check: non-(8,128)-aligned shape exercises the zero-padding path.
    k3, k4 = jax.random.split(k1)
    out_b = jax.random.normal(k3, (2, 3, 10, 10), dtype=jnp.float32)
    sty_b = jax.random.normal(k4, (2, 3, 10, 10), dtype=jnp.float32) * 0.7 - 0.2
    loss_b = style_loss(out_b, sty_b)
    jax.block_until_ready(loss_b)
    ref_b = _reference_style_loss(out_b, sty_b)
    assert jnp.allclose(loss_b, ref_b, rtol=1e-4, atol=1e-6), (loss_b, ref_b)

    # Extra check: HW > TILE_HW exercises the streaming multi-block reduction.
    k5, k6 = jax.random.split(k2)
    out_c = jax.random.normal(k5, (1, 8, 48, 48), dtype=jnp.float32)
    sty_c = jax.random.normal(k6, (1, 8, 48, 48), dtype=jnp.float32) * 2.0 + 1.0
    loss_c = style_loss(out_c, sty_c)
    jax.block_until_ready(loss_c)
    ref_c = _reference_style_loss(out_c, sty_c)
    assert jnp.allclose(loss_c, ref_c, rtol=1e-4, atol=1e-6), (loss_c, ref_c)

    print("KERNEL_OK")
</pallas_src>

<mosaic_0001>
module attributes {stable_mosaic.version = 11 : i64} {
  func.func @_style_loss_kernel(%arg0: i32, %arg1: i32, %arg2: memref<8x256xf32, #tpu.memory_space<vmem>>, %arg3: memref<8x256xf32, #tpu.memory_space<vmem>>, %arg4: memref<8x1xf32, #tpu.memory_space<vmem>>, %arg5: memref<8x1xf32, #tpu.memory_space<vmem>>, %arg6: memref<8x1xf32, #tpu.memory_space<vmem>>, %arg7: memref<8x1xf32, #tpu.memory_space<vmem>>, %arg8: memref<8x1xf32, #tpu.memory_space<vmem>>) attributes {dimension_semantics = [#tpu.dimension_semantics<parallel>, #tpu.dimension_semantics<arbitrary>], iteration_bounds = array<i64: 1, 1>, scalar_prefetch = 0 : i64, scratch_operands = 4 : i64, tpu.core_type = #tpu.core_type<tc>, window_params = [{transform_indices = @transform_0, window_bounds = array<i64: 8, 256>}, {transform_indices = @transform_1, window_bounds = array<i64: 8, 256>}, {transform_indices = @transform_2, window_bounds = array<i64: 8, 1>}]} {
    %c0_i32 = arith.constant 0 : i32
    %0 = arith.cmpi eq, %arg1, %c0_i32 : i32
    %1 = arith.extui %0 : i1 to i32
    %c0_i32_0 = arith.constant 0 : i32
    %2 = arith.cmpi ne, %1, %c0_i32_0 : i32
    scf.if %2 {
      %cst_25 = arith.constant 0.000000e+00 : f32
      %30 = vector.broadcast %cst_25 : f32 to vector<8x1xf32>
      %c0_26 = arith.constant 0 : index
      %c0_27 = arith.constant 0 : index
      %31 = vector.load %arg5[%c0_26, %c0_27] : memref<8x1xf32, #tpu.memory_space<vmem>>, vector<8x1xf32>
      tpu.vector_store %arg5[%c0_26, %c0_27], %30 {strides = array<i32>} : memref<8x1xf32, #tpu.memory_space<vmem>>, vector<8x1xf32>,
      %cst_28 = arith.constant 0.000000e+00 : f32
      %32 = vector.broadcast %cst_28 : f32 to vector<8x1xf32>
      %c0_29 = arith.constant 0 : index
      %c0_30 = arith.constant 0 : index
      %33 = vector.load %arg6[%c0_29, %c0_30] : memref<8x1xf32, #tpu.memory_space<vmem>>, vector<8x1xf32>
      tpu.vector_store %arg6[%c0_29, %c0_30], %32 {strides = array<i32>} : memref<8x1xf32, #tpu.memory_space<vmem>>, vector<8x1xf32>,
      %cst_31 = arith.constant 0.000000e+00 : f32
      %34 = vector.broadcast %cst_31 : f32 to vector<8x1xf32>
      %c0_32 = arith.constant 0 : index
      %c0_33 = arith.constant 0 : index
      %35 = vector.load %arg7[%c0_32, %c0_33] : memref<8x1xf32, #tpu.memory_space<vmem>>, vector<8x1xf32>
      tpu.vector_store %arg7[%c0_32, %c0_33], %34 {strides = array<i32>} : memref<8x1xf32, #tpu.memory_space<vmem>>, vector<8x1xf32>,
      %cst_34 = arith.constant 0.000000e+00 : f32
      %36 = vector.broadcast %cst_34 : f32 to vector<8x1xf32>
      %c0_35 = arith.constant 0 : index
      %c0_36 = arith.constant 0 : index
      %37 = vector.load %arg8[%c0_35, %c0_36] : memref<8x1xf32, #tpu.memory_space<vmem>>, vector<8x1xf32>
      tpu.vector_store %arg8[%c0_35, %c0_36], %36 {strides = array<i32>} : memref<8x1xf32, #tpu.memory_space<vmem>>, vector<8x1xf32>,
    } else {
    }
    %c0 = arith.constant 0 : index
    %c0_1 = arith.constant 0 : index
    %3 = vector.load %arg2[%c0, %c0_1] : memref<8x256xf32, #tpu.memory_space<vmem>>, vector<8x256xf32>
    %c0_2 = arith.constant 0 : index
    %c0_3 = arith.constant 0 : index
    %4 = vector.load %arg3[%c0_2, %c0_3] : memref<8x256xf32, #tpu.memory_space<vmem>>, vector<8x256xf32>
    %c0_4 = arith.constant 0 : index
    %c0_5 = arith.constant 0 : index
    %5 = vector.load %arg5[%c0_4, %c0_5] : memref<8x1xf32, #tpu.memory_space<vmem>>, vector<8x1xf32>
    %cst = arith.constant dense<0.000000e+00> : vector<8xf32>
    %6 = vector.multi_reduction <add>, %3, %cst [1] : vector<8x256xf32> to vector<8xf32>
    %7 = vector.shape_cast %6 : vector<8xf32> to vector<8x1xf32>
    %8 = arith.addf %5, %7 : vector<8x1xf32>
    %c0_6 = arith.constant 0 : index
    %c0_7 = arith.constant 0 : index
    %9 = vector.load %arg5[%c0_6, %c0_7] : memref<8x1xf32, #tpu.memory_space<vmem>>, vector<8x1xf32>
    tpu.vector_store %arg5[%c0_6, %c0_7], %8 {strides = array<i32>} : memref<8x1xf32, #tpu.memory_space<vmem>>, vector<8x1xf32>,
    %c0_8 = arith.constant 0 : index
    %c0_9 = arith.constant 0 : index
    %10 = vector.load %arg6[%c0_8, %c0_9] : memref<8x1xf32, #tpu.memory_space<vmem>>, vector<8x1xf32>
    %11 = arith.mulf %3, %3 : vector<8x256xf32>
    %cst_10 = arith.constant dense<0.000000e+00> : vector<8xf32>
    %12 = vector.multi_reduction <add>, %11, %cst_10 [1] : vector<8x256xf32> to vector<8xf32>
    %13 = vector.shape_cast %12 : vector<8xf32> to vector<8x1xf32>
    %14 = arith.addf %10, %13 : vector<8x1xf32>
    %c0_11 = arith.constant 0 : index
    %c0_12 = arith.constant 0 : index
    %15 = vector.load %arg6[%c0_11, %c0_12] : memref<8x1xf32, #tpu.memory_space<vmem>>, vector<8x1xf32>
    tpu.vector_store %arg6[%c0_11, %c0_12], %14 {strides = array<i32>} : memref<8x1xf32, #tpu.memory_space<vmem>>, vector<8x1xf32>,
    %c0_13 = arith.constant 0 : index
    %c0_14 = arith.constant 0 : index
    %16 = vector.load %arg7[%c0_13, %c0_14] : memref<8x1xf32, #tpu.memory_space<vmem>>, vector<8x1xf32>
    %cst_15 = arith.constant dense<0.000000e+00> : vector<8xf32>
    %17 = vector.multi_reduction <add>, %4, %cst_15 [1] : vector<8x256xf32> to vector<8xf32>
    %18 = vector.shape_cast %17 : vector<8xf32> to vector<8x1xf32>
    %19 = arith.addf %16, %18 : vector<8x1xf32>
    %c0_16 = arith.constant 0 : index
    %c0_17 = arith.constant 0 : index
    %20 = vector.load %arg7[%c0_16, %c0_17] : memref<8x1xf32, #tpu.memory_space<vmem>>, vector<8x1xf32>
    tpu.vector_store %arg7[%c0_16, %c0_17], %19 {strides = array<i32>} : memref<8x1xf32, #tpu.memory_space<vmem>>, vector<8x1xf32>,
    %c0_18 = arith.constant 0 : index
    %c0_19 = arith.constant 0 : index
    %21 = vector.load %arg8[%c0_18, %c0_19] : memref<8x1xf32, #tpu.memory_space<vmem>>, vector<8x1xf32>
    %22 = arith.mulf %4, %4 : vector<8x256xf32>
    %cst_20 = arith.constant dense<0.000000e+00> : vector<8xf32>
    %23 = vector.multi_reduction <add>, %22, %cst_20 [1] : vector<8x256xf32> to vector<8xf32>
    %24 = vector.shape_cast %23 : vector<8xf32> to vector<8x1xf32>
    %25 = arith.addf %21, %24 : vector<8x1xf32>
    %c0_21 = arith.constant 0 : index
    %c0_22 = arith.constant 0 : index
    %26 = vector.load %arg8[%c0_21, %c0_22] : memref<8x1xf32, #tpu.memory_space<vmem>>, vector<8x1xf32>
    tpu.vector_store %arg8[%c0_21, %c0_22], %25 {strides = array<i32>} : memref<8x1xf32, #tpu.memory_space<vmem>>, vector<8x1xf32>,
    %c0_i32_23 = arith.constant 0 : i32
    %27 = arith.cmpi eq, %arg1, %c0_i32_23 : i32
    %28 = arith.extui %27 : i1 to i32
    %c0_i32_24 = arith.constant 0 : i32
    %29 = arith.cmpi ne, %28, %c0_i32_24 : i32
    scf.if %29 {
      %c0_25 = arith.constant 0 : index
      %c0_26 = arith.constant 0 : index
      %30 = vector.load %arg5[%c0_25, %c0_26] : memref<8x1xf32, #tpu.memory_space<vmem>>, vector<8x1xf32>
      %cst_27 = arith.constant 3.906250e-03 : f32
      %31 = vector.broadcast %cst_27 : f32 to vector<8x1xf32>
      %32 = arith.mulf %30, %31 : vector<8x1xf32>
      %c0_28 = arith.constant 0 : index
      %c0_29 = arith.constant 0 : index
      %33 = vector.load %arg7[%c0_28, %c0_29] : memref<8x1xf32, #tpu.memory_space<vmem>>, vector<8x1xf32>
      %cst_30 = arith.constant 3.906250e-03 : f32
      %34 = vector.broadcast %cst_30 : f32 to vector<8x1xf32>
      %35 = arith.mulf %33, %34 : vector<8x1xf32>
      %c0_31 = arith.constant 0 : index
      %c0_32 = arith.constant 0 : index
      %36 = vector.load %arg6[%c0_31, %c0_32] : memref<8x1xf32, #tpu.memory_space<vmem>>, vector<8x1xf32>
      %c0_33 = arith.constant 0 : index
      %c0_34 = arith.constant 0 : index
      %37 = vector.load %arg5[%c0_33, %c0_34] : memref<8x1xf32, #tpu.memory_space<vmem>>, vector<8x1xf32>
      %38 = arith.mulf %37, %32 : vector<8x1xf32>
      %39 = arith.subf %36, %38 : vector<8x1xf32>
      %cst_35 = arith.constant 0.00392156886 : f32
      %40 = vector.broadcast %cst_35 : f32 to vector<8x1xf32>
      %41 = arith.mulf %39, %40 : vector<8x1xf32>
      %c0_36 = arith.constant 0 : index
      %c0_37 = arith.constant 0 : index
      %42 = vector.load %arg8[%c0_36, %c0_37] : memref<8x1xf32, #tpu.memory_space<vmem>>, vector<8x1xf32>
      %c0_38 = arith.constant 0 : index
      %c0_39 = arith.constant 0 : index
      %43 = vector.load %arg7[%c0_38, %c0_39] : memref<8x1xf32, #tpu.memory_space<vmem>>, vector<8x1xf32>
      %44 = arith.mulf %43, %35 : vector<8x1xf32>
      %45 = arith.subf %42, %44 : vector<8x1xf32>
      %cst_40 = arith.constant 0.00392156886 : f32
      %46 = vector.broadcast %cst_40 : f32 to vector<8x1xf32>
      %47 = arith.mulf %45, %46 : vector<8x1xf32>
      %cst_41 = arith.constant 0.000000e+00 : f32
      %48 = vector.broadcast %cst_41 : f32 to vector<8x1xf32>
      %49 = arith.maximumf %41, %48 : vector<8x1xf32>
      %cst_42 = arith.constant 9.99999974E-6 : f32
      %50 = vector.broadcast %cst_42 : f32 to vector<8x1xf32>
      %51 = arith.addf %49, %50 : vector<8x1xf32>
      %52 = math.sqrt %51 : vector<8x1xf32>
      %cst_43 = arith.constant 0.000000e+00 : f32
      %53 = vector.broadcast %cst_43 : f32 to vector<8x1xf32>
      %54 = arith.maximumf %47, %53 : vector<8x1xf32>
      %cst_44 = arith.constant 9.99999974E-6 : f32
      %55 = vector.broadcast %cst_44 : f32 to vector<8x1xf32>
      %56 = arith.addf %54, %55 : vector<8x1xf32>
      %57 = math.sqrt %56 : vector<8x1xf32>
      %58 = arith.subf %32, %35 : vector<8x1xf32>
      %59 = arith.mulf %58, %58 : vector<8x1xf32>
      %60 = arith.subf %52, %57 : vector<8x1xf32>
      %61 = arith.mulf %60, %60 : vector<8x1xf32>
      %62 = arith.addf %59, %61 : vector<8x1xf32>
      %c0_45 = arith.constant 0 : index
      %c0_46 = arith.constant 0 : index
      %63 = vector.load %arg4[%c0_45, %c0_46] : memref<8x1xf32, #tpu.memory_space<vmem>>, vector<8x1xf32>
      tpu.vector_store %arg4[%c0_45, %c0_46], %62 {strides = array<i32>} : memref<8x1xf32, #tpu.memory_space<vmem>>, vector<8x1xf32>,
    } else {
    }
    return
  }
  func.func @transform_0(%arg0: i32, %arg1: i32) -> (i32, i32) {
    %c0_i32 = arith.constant 0 : i32
    return %arg0, %arg1 : i32, i32
  }
  func.func @transform_1(%arg0: i32, %arg1: i32) -> (i32, i32) {
    %c0_i32 = arith.constant 0 : i32
    return %arg0, %arg1 : i32, i32
  }
  func.func @transform_2(%arg0: i32, %arg1: i32) -> (i32, i32) {
    %c0_i32 = arith.constant 0 : i32
    %c0_i32_0 = arith.constant 0 : i32
    return %arg0, %c0_i32 : i32, i32
  }
}

</mosaic_0001>

<llo_original>
// kernel: tpu_custom_call.1
$region0: #{tpu_custom_call.1}
  #allocation0 [shape = 'u32[]', space=smem, size = 0x4, offset = 0x4, fixed_abs, tag = 'smem constant byte address 0x4 - core index']
  #allocation1 [shape = 'u32[144,128]{1,0:T(1,128)}', space=vmem, size = 0x12000, scoped, tag = 'internal scratch']
  #allocation2 [shape = 'f32[8,1]{1,0:T(8,128)}', space=vmem, size = 0x1000, scoped, tag = 'scratch operand']
  #allocation3 [shape = 'f32[8,1]{1,0:T(8,128)}', space=vmem, size = 0x1000, scoped, tag = 'scratch operand']
  #allocation4 [shape = 'f32[8,1]{1,0:T(8,128)}', space=vmem, size = 0x1000, scoped, tag = 'scratch operand']
  #allocation5 [shape = 'f32[8,1]{1,0:T(8,128)}', space=vmem, size = 0x1000, scoped, tag = 'scratch operand']
  %s0 = inlined_call_operand.hbm [shape: f32[8,256], index: 0, kind: input, shape index: {}]
  %s1 = inlined_call_operand.hbm [shape: f32[8,256], index: 1, kind: input, shape index: {}]
  %s2 = inlined_call_operand.vmem [shape: f32[8,1], index: 2, kind: output, shape index: {}]
  %s3 = sld [smem:[#allocation0]]
  $region34: #{tpu_custom_call.1} parent=0
    _
  %s5 = ssub.s32 1, %s3
  %s6 = scalar_select 0, %s5, %s3
  $region1: #{tpu_custom_call.1} parent=0
    #allocation6 [shape = 'u8[8192]{0}', space=vmem, size = 0x2000, scoped, tag = 'input window, operand 0, single buffered']
    #allocation7 [shape = 's32[1]{0}', space=sflag, size = 0x4, scoped, tag = 'scoped memory for tpu_custom_call.1']
    #allocation8 [shape = 'u8[8192]{0}', space=vmem, size = 0x2000, scoped, tag = 'input window, operand 1, single buffered']
    #allocation9 [shape = 's32[1]{0}', space=sflag, size = 0x4, scoped, tag = 'scoped memory for tpu_custom_call.1']
    %7 = vsyncpa [#allocation7], 0
    %8 = vsyncpa [#allocation9], 0
    // Predicated region
    $region2: #{tpu_custom_call.1} parent=1 // pred_check
      _
    $region3: #{tpu_custom_call.1} parent=1 // pred_check_branch
      %10 = sbr.rel (0) target = $region5
    $region4: #{tpu_custom_call.1} parent=1 // pred_region
      %s12 = ssub.s32 256, 256
      %13 = vsyncadd [#allocation7], %s12
      %s15 = sshll.u32 [#allocation6], 4
      %s16 = int_to_ptr.vmem [resolvable:$true] %s15
      %18 = dma.hbm_to_vmem [thread:$0]  %s0, 256, %s16, [#allocation7]
    $region5: #{tpu_custom_call.1} parent=1 // pred_fallthru
      _
    // Predicated region
    $region6: #{tpu_custom_call.1} parent=1 // pred_check
      _
    $region7: #{tpu_custom_call.1} parent=1 // pred_check_branch
      %20 = sbr.rel (0) target = $region9
    $region8: #{tpu_custom_call.1} parent=1 // pred_region
      %s22 = ssub.s32 256, 256
      %23 = vsyncadd [#allocation9], %s22
      %s25 = sshll.u32 [#allocation8], 4
      %s26 = int_to_ptr.vmem [resolvable:$true] %s25
      %28 = dma.hbm_to_vmem [thread:$0]  %s1, 256, %s26, [#allocation9]
    $region9: #{tpu_custom_call.1} parent=1 // pred_fallthru
      _
    // Predicated region
    $region10: #{tpu_custom_call.1} parent=1 // pred_check
      _
    $region11: #{tpu_custom_call.1} parent=1 // pred_check_branch
      %30 = sbr.rel (0) target = $region13
    $region12: #{tpu_custom_call.1} parent=1 // pred_region
      %31 = dma.done [#allocation7], 256
    $region13: #{tpu_custom_call.1} parent=1 // pred_fallthru
      _
    // Predicated region
    $region14: #{tpu_custom_call.1} parent=1 // pred_check
      _
    $region15: #{tpu_custom_call.1} parent=1 // pred_check_branch
      %33 = sbr.rel (0) target = $region17
    $region16: #{tpu_custom_call.1} parent=1 // pred_region
      %34 = dma.done [#allocation9], 256
    $region17: #{tpu_custom_call.1} parent=1 // pred_fallthru
      _
    %p35 = scmp.eq.s32.totalorder 0, 0
    // Predicated region
    $region18: #{tpu_custom_call.1} parent=1 // pred_check
      %p36 = pneg %p35
    $region19: #{tpu_custom_call.1} parent=1 // pred_check_branch
      %38 = sbr.rel (%p36) target = $region21
    $region20: #{tpu_custom_call.1} parent=1 // pred_region
      %vm39 = vcmask 7168
      %40 = vst.msk [vmem:[#allocation2] sm:$0xff] %vm39, 0.0
      %41 = vst.msk [vmem:[#allocation3] sm:$0xff] %vm39, 0.0
      %42 = vst.msk [vmem:[#allocation4] sm:$0xff] %vm39, 0.0
      %43 = vst.msk [vmem:[#allocation5] sm:$0xff] %vm39, 0.0
    $region21: #{tpu_custom_call.1} parent=1 // pred_fallthru
      _
    %v44 = vld [vmem:[#allocation6] sm:$0xff]
    %v45 = vld [vmem:[#allocation6 + $0x8] sm:$0xff]
    %v46 = vld [vmem:[#allocation8] sm:$0xff]
    %v47 = vld [vmem:[#allocation8 + $0x8] sm:$0xff]
    %v48 = vld [vmem:[#allocation2] sm:$0xff]
    %v49 = vadd.f32 %v44, %v45
    %50 = vadd.xlane.f32.xlu0 %v49
    %v51 = vpop.xlane.xlu0 %50
    %v52 = vadd.f32 %v48, %v51
    %vm53 = vcmask 7168
    %54 = vst.msk [vmem:[#allocation2] sm:$0xff] %vm53, %v52
    %v55 = vld [vmem:[#allocation3] sm:$0xff]
    %v56 = vmul.f32 %v44, %v44
    %v57 = vmul.f32 %v45, %v45
    %v58 = vadd.f32 %v56, %v57
    %59 = vadd.xlane.f32.xlu0 %v58
    %v60 = vpop.xlane.xlu0 %59
    %v61 = vadd.f32 %v55, %v60
    %62 = vst.msk [vmem:[#allocation3] sm:$0xff] %vm53, %v61
    %v63 = vld [vmem:[#allocation4] sm:$0xff]
    %v64 = vadd.f32 %v46, %v47
    %65 = vadd.xlane.f32.xlu0 %v64
    %v66 = vpop.xlane.xlu0 %65
    %v67 = vadd.f32 %v63, %v66
    %68 = vst.msk [vmem:[#allocation4] sm:$0xff] %vm53, %v67
    %v69 = vld [vmem:[#allocation5] sm:$0xff]
    %v70 = vmul.f32 %v46, %v46
    %v71 = vmul.f32 %v47, %v47
    %v72 = vadd.f32 %v70, %v71
    %73 = vadd.xlane.f32.xlu0 %v72
    %v74 = vpop.xlane.xlu0 %73
    %v75 = vadd.f32 %v69, %v74
    %76 = vst.msk [vmem:[#allocation5] sm:$0xff] %vm53, %v75
    // Predicated region
    $region22: #{tpu_custom_call.1} parent=1 // pred_check
      %p77 = pneg %p35
    $region23: #{tpu_custom_call.1} parent=1 // pred_check_branch
      %79 = sbr.rel (%p77) target = $region25
    $region24: #{tpu_custom_call.1} parent=1 // pred_region
      %v80 = vld [vmem:[#allocation2] sm:$0xff]
      %v81 = vmul.f32 %v80, 0.00390625
      %v82 = vld [vmem:[#allocation4] sm:$0xff]
      %v83 = vmul.f32 %v82, 0.00390625
      %v84 = vld [vmem:[#allocation3] sm:$0xff]
      %v85 = vmul.f32 %v80, %v81
      %v86 = vsub.f32 %v84, %v85
      %v87 = vmul.f32 %v86, 0.003921569
      %v88 = vld [vmem:[#allocation5] sm:$0xff]
      %v89 = vmul.f32 %v82, %v83
      %v90 = vsub.f32 %v88, %v89
      %v91 = vmul.f32 %v90, 0.003921569
      %v92 = vmax.f32 %v87, 0.0
      %v93 = vadd.f32 %v92, 1e-05
      %v94 = vrsqrt.pop %v93
      %v95 = vmul.f32 %v93, %v94
      %vm96 = vcmp.eq.f32.partialorder %v93, inf
      %v97 = vsel %vm96, %v93, %v95
      %vm98 = vcmp.eq.f32.partialorder %v93, 0.0
      %v99 = vand.u32 %v93, 2147483648
      %v100 = vsel %vm98, %v99, %v97
      %v101 = vmax.f32 %v91, 0.0
      %v102 = vadd.f32 %v101, 1e-05
      %v103 = vrsqrt.pop %v102
      %v104 = vmul.f32 %v102, %v103
      %vm105 = vcmp.eq.f32.partialorder %v102, inf
      %v106 = vsel %vm105, %v102, %v104
      %vm107 = vcmp.eq.f32.partialorder %v102, 0.0
      %v108 = vand.u32 %v102, 2147483648
      %v109 = vsel %vm107, %v108, %v106
      %v110 = vsub.f32 %v81, %v83
      %v111 = vmul.f32 %v110, %v110
      %v112 = vsub.f32 %v100, %v109
      %v113 = vmul.f32 %v112, %v112
      %v114 = vadd.f32 %v111, %v113
      %115 = vst.msk [vmem:[%s2] sm:$0xff] %vm53, %v114
    $region25: #{tpu_custom_call.1} parent=1 // pred_fallthru
      _
    // Predicated region
    $region26: #{tpu_custom_call.1} parent=1 // pred_check
      _
    $region27: #{tpu_custom_call.1} parent=1 // pred_check_branch
      %117 = sbr.rel (0) target = $region29
    $region28: #{tpu_custom_call.1} parent=1 // pred_region
      _
    $region29: #{tpu_custom_call.1} parent=1 // pred_fallthru
      _
    // Predicated region
    $region30: #{tpu_custom_call.1} parent=1 // pred_check
      _
    $region31: #{tpu_custom_call.1} parent=1 // pred_check_branch
      %119 = sbr.rel (0) target = $region33
    $region32: #{tpu_custom_call.1} parent=1 // pred_region
      _
    $region33: #{tpu_custom_call.1} parent=1 // pred_fallthru
      _
    %120 = vsyncpa [#allocation7], 1
    %121 = vsyncpa [#allocation9], 1

</llo_original>
